<compile_context>
chip_gen: v7x
topology: tpu7x:2x2x1
jax: 0.10.0
libtpu: 0.0.40
codegen_flags: <defaults>
</compile_context>

<pallas_src>
import functools
import math

import jax
import jax.numpy as jnp
from jax import lax
from jax.experimental import pallas as pl
from jax.experimental.pallas import tpu as pltpu


def _attn_head_kernel(*refs, scale, use_mask):
    """One grid step = (batch n, q-tile qi, head h); fc_out fused over heads."""
    if use_mask:
        (bias_ref, q_ref, k_ref, v_ref, w_ref, b_ref,
         out_ref, attn_ref, acc_ref) = refs
    else:
        (q_ref, k_ref, v_ref, w_ref, b_ref,
         out_ref, attn_ref, acc_ref) = refs

    h = pl.program_id(2)

    @pl.when(h == 0)
    def _():
        acc_ref[...] = jnp.zeros_like(acc_ref)

    # Contiguous per-head tiles delivered by the DMA (bf16 from the wrapper).
    # Fold 1/sqrt(D) into q (cheaper than scaling the (tq, S) logits).
    q = (q_ref[0, 0].astype(jnp.float32) * scale).astype(jnp.bfloat16)  # (tq, D)
    k = k_ref[0, 0]                                                     # (S, D)
    v = v_ref[0, 0]                                                     # (S, D)

    # logits = (q/sqrt(D)) @ k^T, contracting last dims (no transpose), f32 acc.
    logits = lax.dot_general(q, k, (((1,), (1,)), ((), ())),
                             preferred_element_type=jnp.float32)        # (tq, S)
    if use_mask:
        # Additive mask bias (0 / -1e20): one add per element instead of
        # compare+select per head.
        logits = logits + bias_ref[0, 0]

    # Numerically-stable softmax in f32; exact reciprocal so the stored
    # attention rows sum to 1 (it is a user-visible output).
    logits = logits - jnp.max(logits, axis=-1, keepdims=True)
    p = jnp.exp(logits)
    inv_l = pl.reciprocal(jnp.sum(p, axis=-1, keepdims=True), approx=False)
    attn = p * inv_l                                                    # (tq, S)
    attn_ref[0, 0] = attn.astype(attn_ref.dtype)

    # context_h = attn @ v_h  (bf16 operands, f32 accumulation) -> (tq, D)
    ctx = jnp.dot(attn.astype(jnp.bfloat16), v,
                  preferred_element_type=jnp.float32)

    # Fused fc_out partial: acc += ctx_h @ W_h^T  (W_h is the (E, D) slab of
    # fc_out weight belonging to head h; contract last dims, no transpose).
    acc_ref[...] += lax.dot_general(ctx.astype(jnp.bfloat16), w_ref[0],
                                    (((1,), (1,)), ((), ())),
                                    preferred_element_type=jnp.float32)

    @pl.when(h == pl.num_programs(2) - 1)
    def _():
        out_ref[0] = (acc_ref[...] + b_ref[...]).astype(out_ref.dtype)


def _pick_q_block(S):
    """Largest q-tile <= 512 that divides S and satisfies the (8,128) rule."""
    if S <= 512:
        return S
    for t in (512, 256, 128, 64, 32, 16, 8):
        if S % t == 0:
            return t
    return S


def self_attention_ph_gate(values, keys, query, mask, fc_w, fc_b, heads,
                           *, attn_dtype=jnp.bfloat16, q_block=None):
    """Pallas forward pass.  Returns (out, attention)."""
    N, S, E = query.shape
    D = E // heads
    assert D * heads == E, "Embedding size must be divisible by heads"

    tq = q_block if q_block is not None else _pick_q_block(S)
    assert S % tq == 0 and (tq == S or tq % 8 == 0)
    n_q = S // tq

    # bf16 cast + head-major relayout in the wrapper.  The cast already forces
    # one XLA copy; the transpose fuses into it, so the relayout is free and the
    # kernel's per-head DMAs are fully contiguous (S, D) tiles.
    def to_heads(x):
        return x.reshape(N, S, heads, D).astype(jnp.bfloat16).transpose(0, 2, 1, 3)

    q = to_heads(query)   # (N, heads, S, D) bf16
    k = to_heads(keys)
    v = to_heads(values)

    # fc_out weight split per head: (heads, E, D) bf16 (slab h is W[:, h*D:(h+1)*D]).
    w = fc_w.reshape(E, heads, D).astype(jnp.bfloat16).transpose(1, 0, 2)
    b = fc_b.astype(jnp.float32).reshape(1, E)

    use_mask = mask is not None
    in_arrays = []
    in_specs = []
    if use_mask:
        m = jnp.asarray(mask)
        if m.ndim == 2:
            m = m[None, None]
        elif m.ndim == 3:
            m = m[:, None] if m.shape[0] == N else m[None]
        Bm = 1 if m.shape[0] == 1 else N
        # Additive bias in bf16 (0 where valid, -1e20 where masked).  A shared
        # mask stays (1,1,S,S) and is kept resident (index_map returns 0 for
        # the batch block); no (N,1,S,S) f32 broadcast is ever materialized.
        bias = jnp.where(m == 0, jnp.float32(-1e20), jnp.float32(0.0))
        bias = jnp.broadcast_to(bias, (Bm, 1, S, S)).astype(jnp.bfloat16)
        if Bm == 1:
            bias_idx = lambda n, qi, h: (0, 0, qi, 0)
        else:
            bias_idx = lambda n, qi, h: (n, 0, qi, 0)
        in_arrays.append(bias)
        in_specs.append(pl.BlockSpec((1, 1, tq, S), bias_idx))

    in_arrays += [q, k, v, w, b]
    in_specs += [
        pl.BlockSpec((1, 1, tq, D), lambda n, qi, h: (n, h, qi, 0)),   # q
        pl.BlockSpec((1, 1, S, D), lambda n, qi, h: (n, h, 0, 0)),     # k
        pl.BlockSpec((1, 1, S, D), lambda n, qi, h: (n, h, 0, 0)),     # v
        pl.BlockSpec((1, E, D), lambda n, qi, h: (h, 0, 0)),           # W_h slab
        pl.BlockSpec((1, E), lambda n, qi, h: (0, 0)),                 # bias (resident)
    ]

    out_specs = (
        pl.BlockSpec((1, tq, E), lambda n, qi, h: (n, qi, 0)),         # accumulator block
        pl.BlockSpec((1, 1, tq, S), lambda n, qi, h: (n, h, qi, 0)),   # attention probs
    )
    out_shape = (jax.ShapeDtypeStruct((N, S, E), query.dtype),
                 jax.ShapeDtypeStruct((N, heads, S, S), attn_dtype))

    # Explicit VMEM budget from the actual block footprint (double-buffered)
    # plus the f32 accumulator scratch, capped for v7x's 64 MiB VMEM.
    attn_bytes = jnp.dtype(attn_dtype).itemsize
    out_bytes = jnp.dtype(query.dtype).itemsize
    blk = (tq * D * 2 + 2 * S * D * 2 + E * D * 2 + E * 4
           + tq * E * out_bytes + tq * S * attn_bytes
           + (tq * S * 2 if use_mask else 0))
    vmem_limit = min(max(2 * blk + tq * E * 4 + (1 << 20), 8 << 20), 64 << 20)

    kernel = functools.partial(_attn_head_kernel,
                               scale=1.0 / math.sqrt(D), use_mask=use_mask)

    out, attention = pl.pallas_call(
        kernel,
        out_shape=out_shape,
        grid=(N, n_q, heads),
        in_specs=in_specs,
        out_specs=out_specs,
        scratch_shapes=[pltpu.VMEM((tq, E), jnp.float32)],
        compiler_params=pltpu.CompilerParams(
            dimension_semantics=("parallel", "parallel", "arbitrary"),
            vmem_limit_bytes=vmem_limit),
    )(*in_arrays)

    return out, attention


def _reference(values, keys, query, mask, fc_w, fc_b, heads):
    """Pure-JAX (f32) reference mirroring the PyTorch forward."""
    N, S, E = query.shape
    D = E // heads
    v = jnp.transpose(values.reshape(N, S, heads, D), (0, 2, 1, 3))
    k = jnp.transpose(keys.reshape(N, S, heads, D), (0, 2, 1, 3))
    q = jnp.transpose(query.reshape(N, S, heads, D), (0, 2, 1, 3))
    energy = jnp.einsum('nhqd,nhkd->nhqk', q, k)
    if mask is not None:
        m = jnp.asarray(mask)
        if m.ndim == 2:
            m = m[None, None]
        elif m.ndim == 3:
            m = m[:, None] if m.shape[0] == N else m[None]
        energy = jnp.where(jnp.broadcast_to(m, energy.shape) == 0,
                           jnp.float32(-1e20), energy)
    attn = jax.nn.softmax(energy / math.sqrt(D), axis=-1)
    out = jnp.einsum('nhqk,nhkd->nhqd', attn, v)
    out = jnp.transpose(out, (0, 2, 1, 3)).reshape(N, S, E)
    out = out @ fc_w.T + fc_b
    return out, attn


if __name__ == "__main__":
    # Small shapes consistent with the module.
    batch, seq_len, embed_size, heads = 2, 8, 32, 4

    key = jax.random.PRNGKey(0)
    kv, kk, kq, kw, kb = jax.random.split(key, 5)

    values = jax.random.normal(kv, (batch, seq_len, embed_size), dtype=jnp.float32)
    keys = jax.random.normal(kk, (batch, seq_len, embed_size), dtype=jnp.float32)
    query = jax.random.normal(kq, (batch, seq_len, embed_size), dtype=jnp.float32)

    # Deterministic fc_out parameters (nn.Linear(heads*head_dim, embed_size)).
    bound = 1.0 / math.sqrt(embed_size)
    fc_w = jax.random.uniform(kw, (embed_size, embed_size),
                              minval=-bound, maxval=bound, dtype=jnp.float32)
    fc_b = jax.random.uniform(kb, (embed_size,),
                              minval=-bound, maxval=bound, dtype=jnp.float32)

    # Shared causal mask kept at (1, 1, S, S): zeros mark invalid positions.
    mask = jnp.tril(jnp.ones((seq_len, seq_len), dtype=jnp.float32))[None, None]

    # Masked path.
    out, attn = self_attention_ph_gate(values, keys, query, mask, fc_w, fc_b, heads)
    out = jax.block_until_ready(out)
    attn = jax.block_until_ready(attn)

    out_ref, attn_ref = _reference(values, keys, query, mask, fc_w, fc_b, heads)
    assert out.shape == (batch, seq_len, embed_size)
    assert attn.shape == (batch, heads, seq_len, seq_len)
    # Tolerances relaxed vs pure-f32 reference because matmul operands and the
    # stored attention probabilities are bf16 (softmax math itself is f32).
    assert jnp.allclose(out, out_ref, atol=5e-2, rtol=5e-2)
    assert jnp.allclose(attn.astype(jnp.float32), attn_ref, atol=3e-2, rtol=5e-2)

    # Unmasked (static no-mask variant).
    out_nm, attn_nm = self_attention_ph_gate(values, keys, query, None,
                                             fc_w, fc_b, heads)
    out_nm = jax.block_until_ready(out_nm)
    out_ref_nm, attn_ref_nm = _reference(values, keys, query, None,
                                         fc_w, fc_b, heads)
    assert jnp.allclose(out_nm, out_ref_nm, atol=5e-2, rtol=5e-2)
    assert jnp.allclose(attn_nm.astype(jnp.float32), attn_ref_nm,
                        atol=3e-2, rtol=5e-2)

    print("KERNEL_OK")
</pallas_src>

<mosaic_0001>
module attributes {stable_mosaic.version = 11 : i64} {
  func.func @_attn_head_kernel(%arg0: i32, %arg1: i32, %arg2: i32, %arg3: memref<1x1x8x8xbf16, #tpu.memory_space<vmem>>, %arg4: memref<1x1x8x8xbf16, #tpu.memory_space<vmem>>, %arg5: memref<1x1x8x8xbf16, #tpu.memory_space<vmem>>, %arg6: memref<1x1x8x8xbf16, #tpu.memory_space<vmem>>, %arg7: memref<1x32x8xbf16, #tpu.memory_space<vmem>>, %arg8: memref<1x32xf32, #tpu.memory_space<vmem>>, %arg9: memref<1x8x32xf32, #tpu.memory_space<vmem>>, %arg10: memref<1x1x8x8xbf16, #tpu.memory_space<vmem>>, %arg11: memref<8x32xf32, #tpu.memory_space<vmem>>) attributes {dimension_semantics = [#tpu.dimension_semantics<parallel>, #tpu.dimension_semantics<parallel>, #tpu.dimension_semantics<arbitrary>], iteration_bounds = array<i64: 2, 1, 4>, scalar_prefetch = 0 : i64, scratch_operands = 1 : i64, tpu.core_type = #tpu.core_type<tc>, window_params = [{transform_indices = @transform_0, window_bounds = array<i64: 1, 1, 8, 8>}, {transform_indices = @transform_1, window_bounds = array<i64: 1, 1, 8, 8>}, {transform_indices = @transform_2, window_bounds = array<i64: 1, 1, 8, 8>}, {transform_indices = @transform_3, window_bounds = array<i64: 1, 1, 8, 8>}, {transform_indices = @transform_4, window_bounds = array<i64: 1, 32, 8>}, {pipeline_mode = #tpu.pipeline_mode<synchronous>, transform_indices = @transform_5, window_bounds = array<i64: 1, 32>}, {transform_indices = @transform_6, window_bounds = array<i64: 1, 8, 32>}, {transform_indices = @transform_7, window_bounds = array<i64: 1, 1, 8, 8>}]} {
    %c0_i32 = arith.constant 0 : i32
    %0 = arith.cmpi eq, %arg2, %c0_i32 : i32
    %1 = arith.extui %0 : i1 to i32
    %c0_i32_0 = arith.constant 0 : i32
    %2 = arith.cmpi ne, %1, %c0_i32_0 : i32
    scf.if %2 {
      %cst_33 = arith.constant 0.000000e+00 : f32
      %44 = vector.broadcast %cst_33 : f32 to vector<8x32xf32>
      %c0_34 = arith.constant 0 : index
      %c0_35 = arith.constant 0 : index
      %45 = vector.load %arg11[%c0_34, %c0_35] : memref<8x32xf32, #tpu.memory_space<vmem>>, vector<8x32xf32>
      tpu.vector_store %arg11[%c0_34, %c0_35], %44 {strides = array<i32>} : memref<8x32xf32, #tpu.memory_space<vmem>>, vector<8x32xf32>,
    } else {
    }
    %c0 = arith.constant 0 : index
    %c0_1 = arith.constant 0 : index
    %c0_2 = arith.constant 0 : index
    %c0_3 = arith.constant 0 : index
    %3 = vector.load %arg4[%c0, %c0_1, %c0_2, %c0_3] : memref<1x1x8x8xbf16, #tpu.memory_space<vmem>>, vector<1x1x8x8xbf16>
    %4 = vector.shape_cast %3 : vector<1x1x8x8xbf16> to vector<8x8xbf16>
    %5 = arith.extf %4 : vector<8x8xbf16> to vector<8x8xf32>
    %cst = arith.constant 0.353553385 : f32
    %6 = vector.broadcast %cst : f32 to vector<8x8xf32>
    %7 = arith.mulf %5, %6 : vector<8x8xf32>
    %8 = arith.truncf %7 : vector<8x8xf32> to vector<8x8xbf16>
    %c0_4 = arith.constant 0 : index
    %c0_5 = arith.constant 0 : index
    %c0_6 = arith.constant 0 : index
    %c0_7 = arith.constant 0 : index
    %9 = vector.load %arg5[%c0_4, %c0_5, %c0_6, %c0_7] : memref<1x1x8x8xbf16, #tpu.memory_space<vmem>>, vector<1x1x8x8xbf16>
    %10 = vector.shape_cast %9 : vector<1x1x8x8xbf16> to vector<8x8xbf16>
    %c0_8 = arith.constant 0 : index
    %c0_9 = arith.constant 0 : index
    %c0_10 = arith.constant 0 : index
    %c0_11 = arith.constant 0 : index
    %11 = vector.load %arg6[%c0_8, %c0_9, %c0_10, %c0_11] : memref<1x1x8x8xbf16, #tpu.memory_space<vmem>>, vector<1x1x8x8xbf16>
    %12 = vector.shape_cast %11 : vector<1x1x8x8xbf16> to vector<8x8xbf16>
    %cst_12 = arith.constant dense<0.000000e+00> : vector<8x8xf32>
    %13 = tpu.matmul %8, %10, %cst_12 {dimension_numbers = #tpu.dot_dimension_numbers<[1], [1], [0], [0], [0, 0, 1, 0], [], []>} : vector<8x8xbf16>, vector<8x8xbf16>, vector<8x8xf32> -> vector<8x8xf32>
    %c0_13 = arith.constant 0 : index
    %c0_14 = arith.constant 0 : index
    %c0_15 = arith.constant 0 : index
    %c0_16 = arith.constant 0 : index
    %14 = vector.load %arg3[%c0_13, %c0_14, %c0_15, %c0_16] : memref<1x1x8x8xbf16, #tpu.memory_space<vmem>>, vector<1x1x8x8xbf16>
    %15 = vector.shape_cast %14 : vector<1x1x8x8xbf16> to vector<8x8xbf16>
    %16 = arith.extf %15 : vector<8x8xbf16> to vector<8x8xf32>
    %17 = arith.addf %13, %16 : vector<8x8xf32>
    %cst_17 = arith.constant dense<0xFF800000> : vector<8xf32>
    %18 = vector.multi_reduction <maximumf>, %17, %cst_17 [1] : vector<8x8xf32> to vector<8xf32>
    %19 = vector.shape_cast %18 : vector<8xf32> to vector<8x1xf32>
    %20 = vector.broadcast %19 : vector<8x1xf32> to vector<8x8xf32>
    %21 = arith.subf %17, %20 : vector<8x8xf32>
    %22 = math.exp %21 : vector<8x8xf32>
    %cst_18 = arith.constant dense<0.000000e+00> : vector<8xf32>
    %23 = vector.multi_reduction <add>, %22, %cst_18 [1] : vector<8x8xf32> to vector<8xf32>
    %24 = vector.shape_cast %23 : vector<8xf32> to vector<8x1xf32>
    %25 = tpu.reciprocal %24 : vector<8x1xf32> -> vector<8x1xf32>
    %26 = vector.broadcast %25 : vector<8x1xf32> to vector<8x8xf32>
    %27 = arith.mulf %22, %26 : vector<8x8xf32>
    %28 = arith.truncf %27 : vector<8x8xf32> to vector<8x8xbf16>
    %c0_19 = arith.constant 0 : index
    %c0_20 = arith.constant 0 : index
    %c0_21 = arith.constant 0 : index
    %c0_22 = arith.constant 0 : index
    %29 = vector.load %arg10[%c0_19, %c0_20, %c0_21, %c0_22] : memref<1x1x8x8xbf16, #tpu.memory_space<vmem>>, vector<1x1x8x8xbf16>
    %30 = vector.shape_cast %29 : vector<1x1x8x8xbf16> to vector<8x8xbf16>
    %31 = vector.shape_cast %28 : vector<8x8xbf16> to vector<1x1x8x8xbf16>
    tpu.vector_store %arg10[%c0_19, %c0_20, %c0_21, %c0_22], %31 {strides = array<i32>} : memref<1x1x8x8xbf16, #tpu.memory_space<vmem>>, vector<1x1x8x8xbf16>,
    %32 = arith.truncf %27 : vector<8x8xf32> to vector<8x8xbf16>
    %cst_23 = arith.constant dense<0.000000e+00> : vector<8x8xf32>
    %33 = tpu.matmul %32, %12, %cst_23 {dimension_numbers = #tpu.dot_dimension_numbers<[1], [0], [0], [1], [0, 0, 1, 1], [], []>} : vector<8x8xbf16>, vector<8x8xbf16>, vector<8x8xf32> -> vector<8x8xf32>
    %c0_24 = arith.constant 0 : index
    %c0_25 = arith.constant 0 : index
    %34 = vector.load %arg11[%c0_24, %c0_25] : memref<8x32xf32, #tpu.memory_space<vmem>>, vector<8x32xf32>
    %35 = arith.truncf %33 : vector<8x8xf32> to vector<8x8xbf16>
    %c0_26 = arith.constant 0 : index
    %c0_27 = arith.constant 0 : index
    %c0_28 = arith.constant 0 : index
    %36 = vector.load %arg7[%c0_26, %c0_27, %c0_28] : memref<1x32x8xbf16, #tpu.memory_space<vmem>>, vector<1x32x8xbf16>
    %37 = vector.shape_cast %36 : vector<1x32x8xbf16> to vector<32x8xbf16>
    %cst_29 = arith.constant dense<0.000000e+00> : vector<8x32xf32>
    %38 = tpu.matmul %35, %37, %cst_29 {dimension_numbers = #tpu.dot_dimension_numbers<[1], [1], [0], [0], [0, 0, 1, 0], [], []>} : vector<8x8xbf16>, vector<32x8xbf16>, vector<8x32xf32> -> vector<8x32xf32>
    %39 = arith.addf %34, %38 : vector<8x32xf32>
    %c0_30 = arith.constant 0 : index
    %c0_31 = arith.constant 0 : index
    %40 = vector.load %arg11[%c0_30, %c0_31] : memref<8x32xf32, #tpu.memory_space<vmem>>, vector<8x32xf32>
    tpu.vector_store %arg11[%c0_30, %c0_31], %39 {strides = array<i32>} : memref<8x32xf32, #tpu.memory_space<vmem>>, vector<8x32xf32>,
    %c3_i32 = arith.constant 3 : i32
    %41 = arith.cmpi eq, %arg2, %c3_i32 : i32
    %42 = arith.extui %41 : i1 to i32
    %c0_i32_32 = arith.constant 0 : i32
    %43 = arith.cmpi ne, %42, %c0_i32_32 : i32
    scf.if %43 {
      %c0_33 = arith.constant 0 : index
      %c0_34 = arith.constant 0 : index
      %44 = vector.load %arg11[%c0_33, %c0_34] : memref<8x32xf32, #tpu.memory_space<vmem>>, vector<8x32xf32>
      %c0_35 = arith.constant 0 : index
      %c0_36 = arith.constant 0 : index
      %45 = vector.load %arg8[%c0_35, %c0_36] : memref<1x32xf32, #tpu.memory_space<vmem>>, vector<1x32xf32>
      %46 = vector.broadcast %45 : vector<1x32xf32> to vector<8x32xf32>
      %47 = arith.addf %44, %46 : vector<8x32xf32>
      %c0_37 = arith.constant 0 : index
      %c0_38 = arith.constant 0 : index
      %c0_39 = arith.constant 0 : index
      %48 = vector.load %arg9[%c0_37, %c0_38, %c0_39] : memref<1x8x32xf32, #tpu.memory_space<vmem>>, vector<1x8x32xf32>
      %49 = vector.shape_cast %48 : vector<1x8x32xf32> to vector<8x32xf32>
      %50 = vector.shape_cast %47 : vector<8x32xf32> to vector<1x8x32xf32>
      tpu.vector_store %arg9[%c0_37, %c0_38, %c0_39], %50 {strides = array<i32>} : memref<1x8x32xf32, #tpu.memory_space<vmem>>, vector<1x8x32xf32>,
    } else {
    }
    return
  }
  func.func @transform_0(%arg0: i32, %arg1: i32, %arg2: i32) -> (i32, i32, i32, i32) {
    %c0_i32 = arith.constant 0 : i32
    %c0_i32_0 = arith.constant 0 : i32
    %c0_i32_1 = arith.constant 0 : i32
    %c0_i32_2 = arith.constant 0 : i32
    return %c0_i32, %c0_i32_0, %arg1, %c0_i32_1 : i32, i32, i32, i32
  }
  func.func @transform_1(%arg0: i32, %arg1: i32, %arg2: i32) -> (i32, i32, i32, i32) {
    %c0_i32 = arith.constant 0 : i32
    %c0_i32_0 = arith.constant 0 : i32
    return %arg0, %arg2, %arg1, %c0_i32 : i32, i32, i32, i32
  }
  func.func @transform_2(%arg0: i32, %arg1: i32, %arg2: i32) -> (i32, i32, i32, i32) {
    %c0_i32 = arith.constant 0 : i32
    %c0_i32_0 = arith.constant 0 : i32
    %c0_i32_1 = arith.constant 0 : i32
    return %arg0, %arg2, %c0_i32, %c0_i32_0 : i32, i32, i32, i32
  }
  func.func @transform_3(%arg0: i32, %arg1: i32, %arg2: i32) -> (i32, i32, i32, i32) {
    %c0_i32 = arith.constant 0 : i32
    %c0_i32_0 = arith.constant 0 : i32
    %c0_i32_1 = arith.constant 0 : i32
    return %arg0, %arg2, %c0_i32, %c0_i32_0 : i32, i32, i32, i32
  }
  func.func @transform_4(%arg0: i32, %arg1: i32, %arg2: i32) -> (i32, i32, i32) {
    %c0_i32 = arith.constant 0 : i32
    %c0_i32_0 = arith.constant 0 : i32
    %c0_i32_1 = arith.constant 0 : i32
    return %arg2, %c0_i32, %c0_i32_0 : i32, i32, i32
  }
  func.func @transform_5(%arg0: i32, %arg1: i32, %arg2: i32) -> (i32, i32) {
    %c0_i32 = arith.constant 0 : i32
    %c0_i32_0 = arith.constant 0 : i32
    %c0_i32_1 = arith.constant 0 : i32
    return %c0_i32, %c0_i32_0 : i32, i32
  }
  func.func @transform_6(%arg0: i32, %arg1: i32, %arg2: i32) -> (i32, i32, i32) {
    %c0_i32 = arith.constant 0 : i32
    %c0_i32_0 = arith.constant 0 : i32
    return %arg0, %arg1, %c0_i32 : i32, i32, i32
  }
  func.func @transform_7(%arg0: i32, %arg1: i32, %arg2: i32) -> (i32, i32, i32, i32) {
    %c0_i32 = arith.constant 0 : i32
    %c0_i32_0 = arith.constant 0 : i32
    return %arg0, %arg2, %arg1, %c0_i32 : i32, i32, i32, i32
  }
}

</mosaic_0001>

<llo_original>
// kernel: tpu_custom_call.1
$region0: #{tpu_custom_call.1}
  #allocation0 [shape = 'u32[]', space=smem, size = 0x4, offset = 0x4, fixed_abs, tag = 'smem constant byte address 0x4 - core index']
  #allocation1 [shape = 'u32[144,128]{1,0:T(1,128)}', space=vmem, size = 0x12000, scoped, tag = 'internal scratch']
  #allocation2 [shape = 'f32[8,32]{1,0:T(8,128)}', space=vmem, size = 0x1000, scoped, tag = 'scratch operand']
  %s0 = inlined_call_operand.vmem [shape: bf16[1,1,8,8], index: 0, kind: input, shape index: {}]
  %s1 = inlined_call_operand.vmem [shape: bf16[2,4,8,8], index: 1, kind: input, shape index: {}]
  %s2 = inlined_call_operand.vmem [shape: bf16[2,4,8,8], index: 2, kind: input, shape index: {}]
  %s3 = inlined_call_operand.hbm [shape: bf16[2,4,8,8], index: 3, kind: input, shape index: {}]
  %s4 = inlined_call_operand.vmem [shape: bf16[4,32,8], index: 4, kind: input, shape index: {}]
  %s5 = inlined_call_operand.vmem [shape: f32[1,32], index: 5, kind: input, shape index: {}]
  %s6 = inlined_call_operand.hbm [shape: f32[2,8,32], index: 6, kind: output, shape index: {0}]
  %s7 = inlined_call_operand.hbm [shape: bf16[2,4,8,8], index: 7, kind: output, shape index: {1}]
  %8 = xla_tuple %s6, %s7
  %s9 = sld [smem:[#allocation0]]
  $region77: #{tpu_custom_call.1} parent=0
    _
  %s11 = ssub.s32 1, %s9
  %s12 = scalar_select 0, %s11, %s9
  $region1: #{tpu_custom_call.1} parent=0
    #allocation3 [shape = 'u8[4096]{0}', space=vmem, size = 0x1000, scoped, tag = 'input window, operand 3']
    #allocation4 [shape = 's32[2]{0}', space=sflag, size = 0x8, scoped, tag = 'scoped memory for tpu_custom_call.1']
    #allocation5 [shape = 's32[2]{0}', space=sflag, size = 0x8, scoped, tag = 'scoped memory for tpu_custom_call.1']
    #allocation6 [shape = 'u8[8192]{0}', space=vmem, size = 0x2000, scoped, tag = 'output window, operand 0']
    #allocation7 [shape = 'u8[4096]{0}', space=vmem, size = 0x1000, scoped, tag = 'output window, operand 1']
    #allocation8 [shape = 's32[2]{0}', space=sflag, size = 0x8, scoped, tag = 'scoped memory for tpu_custom_call.1']
    %13 = vsyncpa [#allocation4], 0
    %s14 = scalar_lea.sflag [#allocation4], 1
    %15 = vsyncpa %s14, 0
    %16 = vsyncpa [#allocation5], 0
    %s17 = scalar_lea.sflag [#allocation5], 1
    %18 = vsyncpa %s17, 0
    %19 = vsyncpa [#allocation8], 0
    %s20 = scalar_lea.sflag [#allocation8], 1
    %21 = vsyncpa %s20, 0
    loop: start=0, step=1, limit=10
    $region2: #{tpu_custom_call.1} parent=1 // loop_pre_header
      _
    $region3: #{tpu_custom_call.1} parent=1 // loop_header
      %s23 = sphi 0, %s27
      %p24 = scmp.ge.s32.totalorder %s23, 10
      %s30 = sphi 0, %s49
      %s31 = sphi 0, %s45
      %s32 = sphi 0, %s41
      %s33 = sphi 0, %s30
      %s34 = sphi 0, %s31
      %s35 = sphi 0, %s32
      %s36 = sphi 0, %s33
      %s37 = sphi 0, %s34
      %s38 = sphi 0, %s35
      %s52 = sphi 0, %s54
      %s55 = sphi 0, %s52
      %s56 = sphi 0, %s55
      %s72 = sphi 0, %s56
      %s82 = sphi 0, %s84
      %s85 = sphi 0, %s82
      %s86 = sphi 0, %s85
      %s102 = sphi 0, %s86
      %s110 = sphi 0, %s112
      %s113 = sphi 0, %s110
      %s114 = sphi 0, %s113
      %s130 = sphi 0, %s114
      %s138 = sphi 0, %s140
      %s141 = sphi 0, %s138
      %s142 = sphi 0, %s141
      %s158 = sphi 0, %s142
      %s164 = sphi 0, %s166
      %s167 = sphi 0, %s164
      %s168 = sphi 0, %s167
      %s184 = sphi 0, %s168
      %s188 = sphi 0, %s188
      %s190 = sphi 0, %s188
      %s191 = sphi 0, %s190
      %s205 = sphi 0, %s191
      %s213 = sphi 0, %s215
      %s216 = sphi 0, %s213
      %s217 = sphi 0, %s216
      %s233 = sphi 0, %s217
      %s243 = sphi 0, %s245
      %s246 = sphi 0, %s243
      %s247 = sphi 0, %s246
      %s263 = sphi 0, %s247
    $region4: #{tpu_custom_call.1} parent=1 // loop_header_branch
      %26 = sbr.rel (%p24) target = $region8
    $region5: #{tpu_custom_call.1} parent=1 // loop_body
      %s28 = ssub.s32 %s23, 1
      %s29 = ssub.s32 %s23, 2
      %s39 = sadd.s32 1, %s32
      %p40 = scmp.ge.s32.totalorder %s39, 4
      %s41 = scalar_select %p40, 0, %s39
      %s42 = sadd.s32 1, %s31
      %s43 = scalar_select %p40, %s42, %s31
      %p44 = scmp.ge.s32.totalorder %s43, 1
      %s45 = scalar_select %p44, 0, %s43
      %s46 = sadd.s32 1, %s30
      %s47 = scalar_select %p44, %s46, %s30
      %p48 = scmp.ge.s32.totalorder %s47, 2
      %s49 = scalar_select %p48, 0, %s47
      %s50 = ssub.s32 %s31, %s45
      %p51 = scmp.eq.s32.totalorder %s50, 0
      %s53 = sadd.s32 %s52, 1
      %s54 = scalar_select %p51, %s52, %s53
      %p57 = pneg %p51
      %p58 = scmp.eq.s32.totalorder %s23, 7
      %p59 = por %p57, %p58
      %p60 = scmp.ne.s32.totalorder %s52, %s55
      %p61 = scmp.eq.s32.totalorder %s23, 0
      %p62 = por %p60, %p61
      %p63 = scmp.ne.s32.totalorder %s52, %s55
      %p64 = scmp.eq.s32.totalorder %s28, 7
      %p65 = por %p63, %p64
      %p66 = scmp.ne.s32.totalorder %s55, %s56
      %p67 = scmp.eq.s32.totalorder %s28, 0
      %p68 = por %p66, %p67
      %p69 = scmp.ne.s32.totalorder %s55, %s56
      %p70 = scmp.eq.s32.totalorder %s29, 7
      %p71 = por %p69, %p70
      %p73 = scmp.ne.s32.totalorder %s56, %s72
      %p74 = scmp.eq.s32.totalorder %s29, 0
      %p75 = por %p73, %p74
      %s76 = ssub.s32 %s30, %s49
      %s77 = ssub.s32 %s32, %s41
      %s78 = sor.u32 %s76, %s77
      %s79 = ssub.s32 %s31, %s45
      %s80 = sor.u32 %s78, %s79
      %p81 = scmp.eq.s32.totalorder %s80, 0
      %s83 = sadd.s32 %s82, 1
      %s84 = scalar_select %p81, %s82, %s83
      %p87 = pneg %p81
      %p88 = scmp.eq.s32.totalorder %s23, 7
      %p89 = por %p87, %p88
      %p90 = scmp.ne.s32.totalorder %s82, %s85
      %p91 = scmp.eq.s32.totalorder %s23, 0
      %p92 = por %p90, %p91
      %p93 = scmp.ne.s32.totalorder %s82, %s85
      %p94 = scmp.eq.s32.totalorder %s28, 7
      %p95 = por %p93, %p94
      %p96 = scmp.ne.s32.totalorder %s85, %s86
      %p97 = scmp.eq.s32.totalorder %s28, 0
      %p98 = por %p96, %p97
      %p99 = scmp.ne.s32.totalorder %s85, %s86
      %p100 = scmp.eq.s32.totalorder %s29, 7
      %p101 = por %p99, %p100
      %p103 = scmp.ne.s32.totalorder %s86, %s102
      %p104 = scmp.eq.s32.totalorder %s29, 0
      %p105 = por %p103, %p104
      %s106 = ssub.s32 %s30, %s49
      %s107 = ssub.s32 %s32, %s41
      %s108 = sor.u32 %s106, %s107
      %p109 = scmp.eq.s32.totalorder %s108, 0
      %s111 = sadd.s32 %s110, 1
      %s112 = scalar_select %p109, %s110, %s111
      %p115 = pneg %p109
      %p116 = scmp.eq.s32.totalorder %s23, 7
      %p117 = por %p115, %p116
      %p118 = scmp.ne.s32.totalorder %s110, %s113
      %p119 = scmp.eq.s32.totalorder %s23, 0
      %p120 = por %p118, %p119
      %p121 = scmp.ne.s32.totalorder %s110, %s113
      %p122 = scmp.eq.s32.totalorder %s28, 7
      %p123 = por %p121, %p122
      %p124 = scmp.ne.s32.totalorder %s113, %s114
      %p125 = scmp.eq.s32.totalorder %s28, 0
      %p126 = por %p124, %p125
      %p127 = scmp.ne.s32.totalorder %s113, %s114
      %p128 = scmp.eq.s32.totalorder %s29, 7
      %p129 = por %p127, %p128
      %p131 = scmp.ne.s32.totalorder %s114, %s130
      %p132 = scmp.eq.s32.totalorder %s29, 0
      %p133 = por %p131, %p132
      %s134 = ssub.s32 %s30, %s49
      %s135 = ssub.s32 %s32, %s41
      %s136 = sor.u32 %s134, %s135
      %p137 = scmp.eq.s32.totalorder %s136, 0
      %s139 = sadd.s32 %s138, 1
      %s140 = scalar_select %p137, %s138, %s139
      %p143 = pneg %p137
      %p144 = scmp.eq.s32.totalorder %s23, 7
      %p145 = por %p143, %p144
      %p146 = scmp.ne.s32.totalorder %s138, %s141
      %p147 = scmp.eq.s32.totalorder %s23, 0
      %p148 = por %p146, %p147
      %p149 = scmp.ne.s32.totalorder %s138, %s141
      %p150 = scmp.eq.s32.totalorder %s28, 7
      %p151 = por %p149, %p150
      %p152 = scmp.ne.s32.totalorder %s141, %s142
      %p153 = scmp.eq.s32.totalorder %s28, 0
      %p154 = por %p152, %p153
      %p155 = scmp.ne.s32.totalorder %s141, %s142
      %p156 = scmp.eq.s32.totalorder %s29, 7
      %p157 = por %p155, %p156
      %p159 = scmp.ne.s32.totalorder %s142, %s158
      %p160 = scmp.eq.s32.totalorder %s29, 0
      %p161 = por %p159, %p160
      %s162 = ssub.s32 %s32, %s41
      %p163 = scmp.eq.s32.totalorder %s162, 0
      %s165 = sadd.s32 %s164, 1
      %s166 = scalar_select %p163, %s164, %s165
      %p169 = pneg %p163
      %p170 = scmp.eq.s32.totalorder %s23, 7
      %p171 = por %p169, %p170
      %p172 = scmp.ne.s32.totalorder %s164, %s167
      %p173 = scmp.eq.s32.totalorder %s23, 0
      %p174 = por %p172, %p173
      %p175 = scmp.ne.s32.totalorder %s164, %s167
      %p176 = scmp.eq.s32.totalorder %s28, 7
      %p177 = por %p175, %p176
      %p178 = scmp.ne.s32.totalorder %s167, %s168
      %p179 = scmp.eq.s32.totalorder %s28, 0
      %p180 = por %p178, %p179
      %p181 = scmp.ne.s32.totalorder %s167, %s168
      %p182 = scmp.eq.s32.totalorder %s29, 7
      %p183 = por %p181, %p182
      %p185 = scmp.ne.s32.totalorder %s168, %s184
      %p186 = scmp.eq.s32.totalorder %s29, 0
      %p187 = por %p185, %p186
      %s189 = sadd.s32 %s188, 1
      %p192 = scmp.eq.s32.totalorder %s23, 7
      %p193 = scmp.ne.s32.totalorder %s188, %s190
      %p194 = scmp.eq.s32.totalorder %s23, 0
      %p195 = por %p193, %p194
      %p196 = scmp.ne.s32.totalorder %s188, %s190
      %p197 = scmp.eq.s32.totalorder %s28, 7
      %p198 = por %p196, %p197
      %p199 = scmp.ne.s32.totalorder %s190, %s191
      %p200 = scmp.eq.s32.totalorder %s28, 0
      %p201 = por %p199, %p200
      %p202 = scmp.ne.s32.totalorder %s190, %s191
      %p203 = scmp.eq.s32.totalorder %s29, 7
      %p204 = por %p202, %p203
      %p206 = scmp.ne.s32.totalorder %s191, %s205
      %p207 = scmp.eq.s32.totalorder %s29, 0
      %p208 = por %p206, %p207
      %s209 = ssub.s32 %s30, %s49
      %s210 = ssub.s32 %s31, %s45
      %s211 = sor.u32 %s209, %s210
      %p212 = scmp.eq.s32.totalorder %s211, 0
      %s214 = sadd.s32 %s213, 1
      %s215 = scalar_select %p212, %s213, %s214
      %p218 = pneg %p212
      %p219 = scmp.eq.s32.totalorder %s23, 7
      %p220 = por %p218, %p219
      %p221 = scmp.ne.s32.totalorder %s213, %s216
      %p222 = scmp.eq.s32.totalorder %s23, 0
      %p223 = por %p221, %p222
      %p224 = scmp.ne.s32.totalorder %s213, %s216
      %p225 = scmp.eq.s32.totalorder %s28, 7
      %p226 = por %p224, %p225
      %p227 = scmp.ne.s32.totalorder %s216, %s217
      %p228 = scmp.eq.s32.totalorder %s28, 0
      %p229 = por %p227, %p228
      %p230 = scmp.ne.s32.totalorder %s216, %s217
      %p231 = scmp.eq.s32.totalorder %s29, 7
      %p232 = por %p230, %p231
      %p234 = scmp.ne.s32.totalorder %s217, %s233
      %p235 = scmp.eq.s32.totalorder %s29, 0
      %p236 = por %p234, %p235
      %s237 = ssub.s32 %s30, %s49
      %s238 = ssub.s32 %s32, %s41
      %s239 = sor.u32 %s237, %s238
      %s240 = ssub.s32 %s31, %s45
      %s241 = sor.u32 %s239, %s240
      %p242 = scmp.eq.s32.totalorder %s241, 0
      %s244 = sadd.s32 %s243, 1
      %s245 = scalar_select %p242, %s243, %s244
      %p248 = pneg %p242
      %p249 = scmp.eq.s32.totalorder %s23, 7
      %p250 = por %p248, %p249
      %p251 = scmp.ne.s32.totalorder %s243, %s246
      %p252 = scmp.eq.s32.totalorder %s23, 0
      %p253 = por %p251, %p252
      %p254 = scmp.ne.s32.totalorder %s243, %s246
      %p255 = scmp.eq.s32.totalorder %s28, 7
      %p256 = por %p254, %p255
      %p257 = scmp.ne.s32.totalorder %s246, %s247
      %p258 = scmp.eq.s32.totalorder %s28, 0
      %p259 = por %p257, %p258
      %p260 = scmp.ne.s32.totalorder %s246, %s247
      %p261 = scmp.eq.s32.totalorder %s29, 7
      %p262 = por %p260, %p261
      %p264 = scmp.ne.s32.totalorder %s247, %s263
      %p265 = scmp.eq.s32.totalorder %s29, 0
      %p266 = por %p264, %p265
      %p267 = scmp.le.s32.totalorder 1, %s23
      %p268 = scmp.lt.s32.totalorder %s23, 9
      %p269 = pnand %p267, %p268
      %p270 = pneg %p269
      // Predicated region
      $region9: #{tpu_custom_call.1} parent=5 // pred_check
        _
      $region10: #{tpu_custom_call.1} parent=5 // pred_check_branch
        %272 = sbr.rel (%p269) target = $region12
      $region11: #{tpu_custom_call.1} parent=5 // pred_region
        %s273 = ssub.s32 %s23, 1
        // Predicated region
        $region13: #{tpu_custom_call.1} parent=11 // pred_check
          %p274 = pneg %p68
        $region14: #{tpu_custom_call.1} parent=11 // pred_check_branch
          %276 = sbr.rel (%p274) target = $region16
        $region15: #{tpu_custom_call.1} parent=11 // pred_region
          %p277 = scmp.lt.s32.totalorder %s34, 0
          %s278 = scalar_select %p277, %s34, 0
          %s279 = smul.addr %s278, 4
          %s280 = scalar_lea.vmem %s0, %s279
        $region16: #{tpu_custom_call.1} parent=11 // pred_fallthru
          _
        // Predicated region
        $region17: #{tpu_custom_call.1} parent=11 // pred_check
          %p281 = pneg %p201
        $region18: #{tpu_custom_call.1} parent=11 // pred_check_branch
          %283 = sbr.rel (%p281) target = $region20
        $region19: #{tpu_custom_call.1} parent=11 // pred_region
          _
        $region20: #{tpu_custom_call.1} parent=11 // pred_fallthru
          _
      $region12: #{tpu_custom_call.1} parent=5 // pred_fallthru
        _
      %p284 = scmp.lt.s32.totalorder %s23, 8
      // Predicated region
      $region21: #{tpu_custom_call.1} parent=5 // pred_check
        %p285 = pneg %p284
      $region22: #{tpu_custom_call.1} parent=5 // pred_check_branch
        %287 = sbr.rel (%p285) target = $region24
      $region23: #{tpu_custom_call.1} parent=5 // pred_region
        // Predicated region
        $region25: #{tpu_custom_call.1} parent=23 // pred_check
          %p288 = pneg %p92
        $region26: #{tpu_custom_call.1} parent=23 // pred_check_branch
          %290 = sbr.rel (%p288) target = $region28
        $region27: #{tpu_custom_call.1} parent=23 // pred_region
          %p291 = scmp.lt.s32.totalorder %s30, 1
          %s292 = scalar_select %p291, %s30, 1
          %p293 = scmp.lt.s32.totalorder %s32, 3
          %s294 = scalar_select %p293, %s32, 3
          %p295 = scmp.lt.s32.totalorder %s31, 0
          %s296 = scalar_select %p295, %s31, 0
          %s297 = sadd.s32 %s296, %s294
          %s298 = smul.addr %s292, 4
          %s299 = sadd.s32 %s297, %s298
          %s300 = smul.addr %s299, 4
          %s301 = scalar_lea.vmem %s1, %s300
        $region28: #{tpu_custom_call.1} parent=23 // pred_fallthru
          _
        // Predicated region
        $region29: #{tpu_custom_call.1} parent=23 // pred_check
          %p302 = pneg %p120
        $region30: #{tpu_custom_call.1} parent=23 // pred_check_branch
          %304 = sbr.rel (%p302) target = $region32
        $region31: #{tpu_custom_call.1} parent=23 // pred_region
          %p305 = scmp.lt.s32.totalorder %s30, 1
          %s306 = scalar_select %p305, %s30, 1
          %p307 = scmp.lt.s32.totalorder %s32, 3
          %s308 = scalar_select %p307, %s32, 3
          %s309 = smul.addr %s306, 4
          %s310 = sadd.s32 %s308, %s309
          %s311 = smul.addr %s310, 4
          %s312 = scalar_lea.vmem %s2, %s311
        $region32: #{tpu_custom_call.1} parent=23 // pred_fallthru
          _
        // Predicated region
        $region33: #{tpu_custom_call.1} parent=23 // pred_check
          %p313 = pneg %p148
        $region34: #{tpu_custom_call.1} parent=23 // pred_check_branch
          %315 = sbr.rel (%p313) target = $region36
        $region35: #{tpu_custom_call.1} parent=23 // pred_region
          %s316 = sand.u32 %s138, 1
          %s317 = scalar_lea.sflag [#allocation4], %s316
          %s318 = sand.u32 %s138, 1
          %s319 = smul.addr %s318, 4
          %s320 = scalar_lea.vmem [#allocation3], %s319
          %s322 = ssub.s32 64, 64
          %323 = vsyncadd %s317, %s322
          %s324 = smul.addr %s30, 4
          %s325 = sadd.s32 %s32, %s324
          %s326 = smul.addr %s325, 64
          %s327 = scalar_lea.hbm %s3, %s326
          %s329 = sshll.u32 %s320, 4
          %s330 = int_to_ptr.vmem [resolvable:$true] %s329
          %332 = dma.hbm_to_vmem [thread:$0]  %s327, 64, %s330, %s317
        $region36: #{tpu_custom_call.1} parent=23 // pred_fallthru
          _
        // Predicated region
        $region37: #{tpu_custom_call.1} parent=23 // pred_check
          %p333 = pneg %p174
        $region38: #{tpu_custom_call.1} parent=23 // pred_check_branch
          %335 = sbr.rel (%p333) target = $region40
        $region39: #{tpu_custom_call.1} parent=23 // pred_region
          %p336 = scmp.lt.s32.totalorder %s32, 3
          %s337 = scalar_select %p336, %s32, 3
          %s338 = smul.addr %s337, 4
          %s339 = smul.addr %s338, 4
          %s340 = scalar_lea.vmem %s4, %s339
        $region40: #{tpu_custom_call.1} parent=23 // pred_fallthru
          _
      $region24: #{tpu_custom_call.1} parent=5 // pred_fallthru
        _
      %p341 = scmp.le.s32.totalorder 1, %s23
      %p342 = scmp.lt.s32.totalorder %s23, 9
      %p343 = pnand %p341, %p342
      %p344 = pneg %p343
      // Predicated region
      $region41: #{tpu_custom_call.1} parent=5 // pred_check
        _
      $region42: #{tpu_custom_call.1} parent=5 // pred_check_branch
        %346 = sbr.rel (%p343) target = $region44
      $region43: #{tpu_custom_call.1} parent=5 // pred_region
        %s347 = ssub.s32 %s23, 1
        %s348 = sand.u32 %s141, 1
        %s349 = scalar_lea.sflag [#allocation4], %s348
        %s350 = sand.u32 %s141, 1
        %s351 = smul.addr %s350, 4
        %s352 = scalar_lea.vmem [#allocation3], %s351
        // Predicated region
        $region45: #{tpu_custom_call.1} parent=43 // pred_check
          %p353 = pneg %p154
        $region46: #{tpu_custom_call.1} parent=43 // pred_check_branch
          %355 = sbr.rel (%p353) target = $region48
        $region47: #{tpu_custom_call.1} parent=43 // pred_region
          %356 = dma.done %s349, 64
        $region48: #{tpu_custom_call.1} parent=43 // pred_fallthru
          _
        %p357 = scmp.lt.s32.totalorder %s34, 0
        %s358 = scalar_select %p357, %s34, 0
        %s359 = smul.addr %s358, 4
        %s360 = scalar_lea.vmem %s0, %s359
        %p361 = pneg %p68
        %p362 = pneg %p65
        %p363 = scmp.lt.s32.totalorder %s33, 1
        %s364 = scalar_select %p363, %s33, 1
        %p365 = scmp.lt.s32.totalorder %s35, 3
        %s366 = scalar_select %p365, %s35, 3
        %p367 = scmp.lt.s32.totalorder %s34, 0
        %s368 = scalar_select %p367, %s34, 0
        %s369 = sadd.s32 %s368, %s366
        %s370 = smul.addr %s364, 4
        %s371 = sadd.s32 %s369, %s370
        %s372 = smul.addr %s371, 4
        %s373 = scalar_lea.vmem %s1, %s372
        %p374 = pneg %p98
        %p375 = pneg %p95
        %p376 = scmp.lt.s32.totalorder %s33, 1
        %s377 = scalar_select %p376, %s33, 1
        %p378 = scmp.lt.s32.totalorder %s35, 3
        %s379 = scalar_select %p378, %s35, 3
        %s380 = smul.addr %s377, 4
        %s381 = sadd.s32 %s379, %s380
        %s382 = smul.addr %s381, 4
        %s383 = scalar_lea.vmem %s2, %s382
        %p384 = pneg %p126
        %p385 = pneg %p123
        %s386 = sand.u32 %s141, 1
        %s387 = scalar_lea.sflag [#allocation4], %s386
        %s388 = sand.u32 %s141, 1
        %s389 = smul.addr %s388, 4
        %s390 = scalar_lea.vmem [#allocation3], %s389
        %p391 = pneg %p154
        %p392 = pneg %p151
        %p393 = scmp.lt.s32.totalorder %s35, 3
        %s394 = scalar_select %p393, %s35, 3
        %s395 = smul.addr %s394, 4
        %s396 = smul.addr %s395, 4
        %s397 = scalar_lea.vmem %s4, %s396
        %p398 = pneg %p180
        %p399 = pneg %p177
        %p400 = pneg %p201
        %p401 = pneg %p198
        %p402 = pneg %p229
        %p403 = pneg %p226
        %s404 = sand.u32 %s216, 1
        %s405 = scalar_lea.sflag [#allocation5], %s404
        %s406 = sand.u32 %s216, 1
        %s407 = smul.addr %s406, 8
        %s408 = scalar_lea.vmem [#allocation6], %s407
        %p409 = pneg %p259
        %p410 = pneg %p256
        %s411 = sand.u32 %s246, 1
        %s412 = scalar_lea.sflag [#allocation8], %s411
        %s413 = sand.u32 %s246, 1
        %s414 = smul.addr %s413, 4
        %s415 = scalar_lea.vmem [#allocation7], %s414
        %p416 = scmp.lt.s32.totalorder %s34, 0
        %s417 = scalar_select %p416, %s34, 0
        %s418 = smul.addr %s417, 4
        %s419 = scalar_lea.vmem %s0, %s418
        %p420 = scmp.lt.s32.totalorder %s33, 1
        %s421 = scalar_select %p420, %s33, 1
        %p422 = scmp.lt.s32.totalorder %s35, 3
        %s423 = scalar_select %p422, %s35, 3
        %p424 = scmp.lt.s32.totalorder %s34, 0
        %s425 = scalar_select %p424, %s34, 0
        %s426 = sadd.s32 %s425, %s423
        %s427 = smul.addr %s421, 4
        %s428 = sadd.s32 %s426, %s427
        %s429 = smul.addr %s428, 4
        %s430 = scalar_lea.vmem %s1, %s429
        %p431 = scmp.lt.s32.totalorder %s33, 1
        %s432 = scalar_select %p431, %s33, 1
        %p433 = scmp.lt.s32.totalorder %s35, 3
        %s434 = scalar_select %p433, %s35, 3
        %s435 = smul.addr %s432, 4
        %s436 = sadd.s32 %s434, %s435
        %s437 = smul.addr %s436, 4
        %s438 = scalar_lea.vmem %s2, %s437
        %p439 = scmp.lt.s32.totalorder %s35, 3
        %s440 = scalar_select %p439, %s35, 3
        %s441 = smul.addr %s440, 4
        %s442 = smul.addr %s441, 4
        %s443 = scalar_lea.vmem %s4, %s442
        %p445 = scmp.eq.s32.totalorder %s35, 0
        // Predicated region
        $region49: #{tpu_custom_call.1} parent=43 // pred_check
          %p446 = pneg %p445
        $region50: #{tpu_custom_call.1} parent=43 // pred_check_branch
          %448 = sbr.rel (%p446) target = $region52
        $region51: #{tpu_custom_call.1} parent=43 // pred_region
          %vm449 = vcmask 261120
          %450 = vst.msk [vmem:[#allocation2] sm:$0xff] %vm449, 0.0
        $region52: #{tpu_custom_call.1} parent=43 // pred_fallthru
          _
        %v451 = vld [vmem:[%s430] sm:$0xf]
        %v452 = vunpack.c.l.bf16 %v451
        %v453 = vmul.f32 %v452, 0.35355338
        %v454 = vpack.c.bf16 %v453, %v453
        %v455 = vld [vmem:[%s438] sm:$0xf]
        %v456 = vld [vmem:[%s352] sm:$0xf]
        %v457 = vld [vmem:[%s419] sm:$0xf]
        %v458 = vunpack.c.l.bf16 %v457
        %vm459 = vcmask 64512
        %v461 = vsel %vm459, %v454, 0
        %v464 = vsel %vm459, %v455, 0
        %466 = vmatprep.subr.bf16.mxu0 0
        %467 = vmatpush1.bf16.xpose.msra.mxu0 %v464
        %468 = vmatprep.subr.bf16.mxu0 0
        %469 = vmatpush1.bf16.xpose.msra.mxu0 0
        %470 = vmatprep.subr.bf16.mxu0 0
        %471 = vmatpush1.bf16.xpose.msra.mxu0 0
        %472 = vmatprep.subr.bf16.mxu0 0
        %473 = vmatpush1.bf16.xpose.msra.mxu0 0
        %474 = vmatprep.subr.bf16.mxu0 0
        %475 = vmatpush1.bf16.xpose.msra.mxu0 0
        %476 = vmatprep.subr.bf16.mxu0 0
        %477 = vmatpush1.bf16.xpose.msra.mxu0 0
        %478 = vmatprep.subr.bf16.mxu0 0
        %479 = vmatpush1.bf16.xpose.msra.mxu0 0
        %480 = vmatprep.subr.bf16.mxu0 0
        %481 = vmatpush1.bf16.xpose.msra.mxu0 0
        %482 = vmatprep.subr.bf16.mxu0 0
        %483 = vmatpush1.bf16.xpose.msra.mxu0 0
        %484 = vmatprep.subr.bf16.mxu0 0
        %485 = vmatpush1.bf16.xpose.msra.mxu0 0
        %486 = vmatprep.subr.bf16.mxu0 0
        %487 = vmatpush1.bf16.xpose.msra.mxu0 0
        %488 = vmatprep.subr.bf16.mxu0 0
        %489 = vmatpush1.bf16.xpose.msra.mxu0 0
        %490 = vmatprep.subr.bf16.mxu0 0
        %491 = vmatpush1.bf16.xpose.msra.mxu0 0
        %492 = vmatprep.subr.bf16.mxu0 0
        %493 = vmatpush1.bf16.xpose.msra.mxu0 0
        %494 = vmatprep.subr.bf16.mxu0 0
        %495 = vmatpush1.bf16.xpose.msra.mxu0 0
        %496 = vmatprep.subr.bf16.mxu0 0
        %497 = vmatpush1.bf16.xpose.msra.mxu0 0
        %498 = vmatprep.mubr.bf16.mxu0 0
        %499 = vmatmul.mubr.bf16.gmra.mrb[0].mxu0 %v461
        %v500 = vpop.f32.mrb[0].mxu0
        %v501 = vadd.f32 %v458, %v500
        %v502 = vpop.f32.mrb[0].mxu0
        %v503 = vpop.f32.mrb[0].mxu0
        %v504 = vpop.f32.mrb[0].mxu0
        %505 = vdwg.mxu0
        %v506 = vsel %vm459, %v501, -inf
        %507 = vmax.xlane.f32.xlu0 %v506
        %v508 = vpop.xlane.xlu0 %507
        %v509 = vsub.f32 %v501, %v508
        %v510 = vmul.f32 %v509, 1.442695
        %v511 = vpow.pop %v510
        %v512 = vsel %vm459, %v511, 0.0
        %513 = vadd.xlane.f32.xlu0 %v512
        %v514 = vpop.xlane.xlu0 %513
        %v515 = vrcp.pop %v514
        %v516 = vmul.f32 %v511, %v515
        %v517 = vpack.c.bf16 %v516, %v516
        %vm518 = vcmask 60416
        %519 = vst.msk [vmem:[%s415] sm:$0xf] %vm518, %v517
        %v521 = vsel %vm459, %v517, 0
        %vm523 = vcmask 1043456
        %v525 = vsel %vm523, %v456, 0
        %527 = vmatprep.subr.bf16.mxu0 0
        %528 = vmatpush1.bf16.msra.mxu0 %v525
        %529 = vmatprep.subr.bf16.mxu0 0
        %530 = vmatpush1.bf16.msra.mxu0 0
        %531 = vmatprep.subr.bf16.mxu0 0
        %532 = vmatpush1.bf16.msra.mxu0 0
        %533 = vmatprep.subr.bf16.mxu0 0
        %534 = vmatpush1.bf16.msra.mxu0 0
        %535 = vmatprep.subr.bf16.mxu0 0
        %536 = vmatpush1.bf16.msra.mxu0 0
        %537 = vmatprep.subr.bf16.mxu0 0
        %538 = vmatpush1.bf16.msra.mxu0 0
        %539 = vmatprep.subr.bf16.mxu0 0
        %540 = vmatpush1.bf16.msra.mxu0 0
        %541 = vmatprep.subr.bf16.mxu0 0
        %542 = vmatpush1.bf16.msra.mxu0 0
        %543 = vmatprep.subr.bf16.mxu0 0
        %544 = vmatpush1.bf16.msra.mxu0 0
        %545 = vmatprep.subr.bf16.mxu0 0
        %546 = vmatpush1.bf16.msra.mxu0 0
        %547 = vmatprep.subr.bf16.mxu0 0
        %548 = vmatpush1.bf16.msra.mxu0 0
        %549 = vmatprep.subr.bf16.mxu0 0
        %550 = vmatpush1.bf16.msra.mxu0 0
        %551 = vmatprep.subr.bf16.mxu0 0
        %552 = vmatpush1.bf16.msra.mxu0 0
        %553 = vmatprep.subr.bf16.mxu0 0
        %554 = vmatpush1.bf16.msra.mxu0 0
        %555 = vmatprep.subr.bf16.mxu0 0
        %556 = vmatpush1.bf16.msra.mxu0 0
        %557 = vmatprep.subr.bf16.mxu0 0
        %558 = vmatpush1.bf16.msra.mxu0 0
        %559 = vmatprep.mubr.bf16.mxu0 0
        %560 = vmatmul.mubr.bf16.gmra.mrb[0].mxu0 %v521
        %v561 = vpop.f32.mrb[0].mxu0
        %v562 = vadd.f32 0.0, %v561
        %v563 = vpop.f32.mrb[0].mxu0
        %v564 = vpop.f32.mrb[0].mxu0
        %v565 = vpop.f32.mrb[0].mxu0
        %566 = vdwg.mxu0
        %v567 = vld [vmem:[#allocation2] sm:$0xff]
        %v568 = vpack.c.bf16 %v562, %v562
        %v569 = vld [vmem:[%s443] sm:$0xf]
        %v570 = vld [vmem:[%s443 + $0x4] sm:$0xf]
        %v571 = vld [vmem:[%s443 + $0x8] sm:$0xf]
        %v572 = vld [vmem:[%s443 + $0xc] sm:$0xf]
        %v577 = vunpack.c.l.b16 %v569
        %v578 = vunpack.c.l.b16 %v570
        %v579 = vunpack.c.l.b16 %v571
        %v580 = vunpack.c.l.b16 %v572
        %v581 = vpack.c.b16 %v578, %v577
        %v582 = vpack.c.b16 %v580, %v579
        %v584 = vsel %vm459, %v568, 0
        %v587 = vsel %vm459, %v581, 0
        %v590 = vsel %vm459, %v582, 0
        %592 = vmatprep.subr.bf16.mxu0 0
        %593 = vmatpush1.bf16.xpose.msra.mxu0 %v587
        %594 = vmatprep.subr.bf16.mxu0 0
        %595 = vmatpush1.bf16.xpose.msra.mxu0 %v590
        %596 = vmatprep.subr.bf16.mxu0 0
        %597 = vmatpush1.bf16.xpose.msra.mxu0 0
        %598 = vmatprep.subr.bf16.mxu0 0
        %599 = vmatpush1.bf16.xpose.msra.mxu0 0
        %600 = vmatprep.subr.bf16.mxu0 0
        %601 = vmatpush1.bf16.xpose.msra.mxu0 0
        %602 = vmatprep.subr.bf16.mxu0 0
        %603 = vmatpush1.bf16.xpose.msra.mxu0 0
        %604 = vmatprep.subr.bf16.mxu0 0
        %605 = vmatpush1.bf16.xpose.msra.mxu0 0
        %606 = vmatprep.subr.bf16.mxu0 0
        %607 = vmatpush1.bf16.xpose.msra.mxu0 0
        %608 = vmatprep.subr.bf16.mxu0 0
        %609 = vmatpush1.bf16.xpose.msra.mxu0 0
        %610 = vmatprep.subr.bf16.mxu0 0
        %611 = vmatpush1.bf16.xpose.msra.mxu0 0
        %612 = vmatprep.subr.bf16.mxu0 0
        %613 = vmatpush1.bf16.xpose.msra.mxu0 0
        %614 = vmatprep.subr.bf16.mxu0 0
        %615 = vmatpush1.bf16.xpose.msra.mxu0 0
        %616 = vmatprep.subr.bf16.mxu0 0
        %617 = vmatpush1.bf16.xpose.msra.mxu0 0
        %618 = vmatprep.subr.bf16.mxu0 0
        %619 = vmatpush1.bf16.xpose.msra.mxu0 0
        %620 = vmatprep.subr.bf16.mxu0 0
        %621 = vmatpush1.bf16.xpose.msra.mxu0 0
        %622 = vmatprep.subr.bf16.mxu0 0
        %623 = vmatpush1.bf16.xpose.msra.mxu0 0
        %624 = vmatprep.mubr.bf16.mxu0 0
        %625 = vmatmul.mubr.bf16.gmra.mrb[0].mxu0 %v584
        %v626 = vpop.f32.mrb[0].mxu0
        %v627 = vadd.f32 0.0, %v626
        %v628 = vpop.f32.mrb[0].mxu0
        %v629 = vpop.f32.mrb[0].mxu0
        %v630 = vpop.f32.mrb[0].mxu0
        %631 = vdwg.mxu0
        %v632 = vadd.f32 %v567, %v627
        %vm633 = vcmask 261120
        %634 = vst.msk [vmem:[#allocation2] sm:$0xff] %vm633, %v632
        %p635 = scmp.eq.s32.totalorder %s35, 3
        // Predicated region
        $region53: #{tpu_custom_call.1} parent=43 // pred_check
          %p636 = pneg %p635
        $region54: #{tpu_custom_call.1} parent=43 // pred_check_branch
          %638 = sbr.rel (%p636) target = $region56
        $region55: #{tpu_custom_call.1} parent=43 // pred_region
          %v639 = vld [vmem:[#allocation2] sm:$0xff]
          %v640 = vld [vmem:[%s5] sm:$0x1]
          %v642 = vlaneseq
          %v643 = vshrl.u32 %v642, 7
          %v644 = vsub.s32 0, %v643
          %v645 = vrot.slane %v640, %v644
          %v647 = vadd.f32 %v639, %v645
          %648 = vst.msk [vmem:[%s408] sm:$0xff] %vm633, %v647
        $region56: #{tpu_custom_call.1} parent=43 // pred_fallthru
          _
        %s649 = sand.u32 %s216, 1
        %s650 = scalar_lea.sflag [#allocation5], %s649
        %s651 = sand.u32 %s216, 1
        %s652 = smul.addr %s651, 8
        %s653 = scalar_lea.vmem [#allocation6], %s652
        %s654 = sand.u32 %s246, 1
        %s655 = scalar_lea.sflag [#allocation8], %s654
        %s656 = sand.u32 %s246, 1
        %s657 = smul.addr %s656, 4
        %s658 = scalar_lea.vmem [#allocation7], %s657
        // Predicated region
        $region57: #{tpu_custom_call.1} parent=43 // pred_check
          %p659 = pneg %p226
        $region58: #{tpu_custom_call.1} parent=43 // pred_check_branch
          %661 = sbr.rel (%p659) target = $region60
        $region59: #{tpu_custom_call.1} parent=43 // pred_region
          %s663 = ssub.s32 128, 128
          %664 = vsyncadd %s650, %s663
          %s665 = sadd.s32 %s34, %s33
          %s666 = smul.addr %s665, 128
          %s667 = scalar_lea.hbm %s6, %s666
          %s669 = sshll.u32 %s653, 4
          %s670 = int_to_ptr.vmem [resolvable:$true] %s669
          %672 = dma.vmem_to_hbm [thread:$0]  %s670, 128, %s667, %s650
        $region60: #{tpu_custom_call.1} parent=43 // pred_fallthru
          _
        // Predicated region
        $region61: #{tpu_custom_call.1} parent=43 // pred_check
          %p673 = pneg %p256
        $region62: #{tpu_custom_call.1} parent=43 // pred_check_branch
          %675 = sbr.rel (%p673) target = $region64
        $region63: #{tpu_custom_call.1} parent=43 // pred_region
          %s677 = ssub.s32 64, 64
          %678 = vsyncadd %s655, %s677
          %s679 = sadd.s32 %s34, %s35
          %s680 = smul.addr %s33, 4
          %s681 = sadd.s32 %s679, %s680
          %s682 = smul.addr %s681, 64
          %s683 = scalar_lea.hbm %s7, %s682
          %s685 = sshll.u32 %s658, 4
          %s686 = int_to_ptr.vmem [resolvable:$true] %s685
          %688 = dma.vmem_to_hbm [thread:$0]  %s686, 64, %s683, %s655
        $region64: #{tpu_custom_call.1} parent=43 // pred_fallthru
          _
      $region44: #{tpu_custom_call.1} parent=5 // pred_fallthru
        _
      %p689 = scmp.le.s32.totalorder 2, %s23
      // Predicated region
      $region65: #{tpu_custom_call.1} parent=5 // pred_check
        %p690 = pneg %p689
      $region66: #{tpu_custom_call.1} parent=5 // pred_check_branch
        %692 = sbr.rel (%p690) target = $region68
      $region67: #{tpu_custom_call.1} parent=5 // pred_region
        %s693 = ssub.s32 %s23, 2
        // Predicated region
        $region69: #{tpu_custom_call.1} parent=67 // pred_check
          %p694 = pneg %p232
        $region70: #{tpu_custom_call.1} parent=67 // pred_check_branch
          %696 = sbr.rel (%p694) target = $region72
        $region71: #{tpu_custom_call.1} parent=67 // pred_region
          %s697 = sand.u32 %s217, 1
          %s698 = scalar_lea.sflag [#allocation5], %s697
          %s699 = sand.u32 %s217, 1
          %s700 = smul.addr %s699, 8
          %s701 = scalar_lea.vmem [#allocation6], %s700
          %702 = dma.done %s698, 128
        $region72: #{tpu_custom_call.1} parent=67 // pred_fallthru
          _
        // Predicated region
        $region73: #{tpu_custom_call.1} parent=67 // pred_check
          %p703 = pneg %p262
        $region74: #{tpu_custom_call.1} parent=67 // pred_check_branch
          %705 = sbr.rel (%p703) target = $region76
        $region75: #{tpu_custom_call.1} parent=67 // pred_region
          %s706 = sand.u32 %s247, 1
          %s707 = scalar_lea.sflag [#allocation8], %s706
          %s708 = sand.u32 %s247, 1
          %s709 = smul.addr %s708, 4
          %s710 = scalar_lea.vmem [#allocation7], %s709
          %711 = dma.done %s707, 64
        $region76: #{tpu_custom_call.1} parent=67 // pred_fallthru
          _
      $region68: #{tpu_custom_call.1} parent=5 // pred_fallthru
        _
    $region6: #{tpu_custom_call.1} parent=1 // loop_footer
      %s27 = sadd.s32 1, %s23
    $region7: #{tpu_custom_call.1} parent=1 // loop_footer_branch
      %22 = sbr.rel target = $region3
    $region8: #{tpu_custom_call.1} parent=1 // loop_exit
      _
    %712 = vsyncpa [#allocation4], 1
    %s713 = scalar_lea.sflag [#allocation4], 1
    %714 = vsyncpa %s713, 1
    %715 = vsyncpa [#allocation5], 1
    %s716 = scalar_lea.sflag [#allocation5], 1
    %717 = vsyncpa %s716, 1
    %718 = vsyncpa [#allocation8], 1
    %s719 = scalar_lea.sflag [#allocation8], 1
    %720 = vsyncpa %s719, 1

</llo_original>
